<compile_context>
chip_gen: v7x
topology: tpu7x:2x2x1
jax: 0.10.0
libtpu: 0.0.40
codegen_flags: <defaults>
</compile_context>

<pallas_src>
import functools

import jax
import jax.numpy as jnp
from jax.experimental import pallas as pl
from jax.experimental.pallas import tpu as pltpu


def _round_up(x, m):
    return (x + m - 1) // m * m


def _device_defaults():
    """(default batch tile, VMEM limit bytes) per TPU generation."""
    kind = ""
    try:
        kind = jax.devices()[0].device_kind.lower()
    except Exception:
        pass
    if "v7" in kind:
        return 256, 48 * 1024 * 1024      # v7x: 64 MiB physical VMEM per TC
    if "v6" in kind or "v5" in kind:
        return 512, 96 * 1024 * 1024      # v5e/v6e: 128 MiB physical VMEM
    return 256, 64 * 1024 * 1024          # unknown: conservative


def _vq_kernel(z_ref, e_ref, esq_ref, zq_ref, loss_ref, min_ref, acc_ref, *,
               batch, mxu_dtype):
    """One (batch tile, codebook tile) step: partial distances -> running argmin."""
    i = pl.program_id(0)          # batch tile
    j = pl.program_id(1)          # codebook (K) tile -- reduction axis
    nk = pl.num_programs(1)
    tb = z_ref.shape[0]
    tk = e_ref.shape[0]

    @pl.when(j == 0)
    def _():
        min_ref[...] = jnp.full_like(min_ref, jnp.inf)
        acc_ref[...] = jnp.zeros_like(acc_ref)

    z = z_ref[...]                                   # [tb, D] native dtype
    e = e_ref[...]                                   # [tk, D] native dtype
    e_sq = esq_ref[...].astype(jnp.float32)          # [1, tk] = 0.5*||e||^2 (+sentinel)

    # Distance matmul operands: optionally bf16 for MXU throughput; accumulate f32.
    if mxu_dtype is None:
        z_mm, e_mm = z, e
    else:
        z_mm, e_mm = z.astype(mxu_dtype), e.astype(mxu_dtype)

    # cross[b, n] = z[b, :] . e[n, :]  -- contract D directly (no transpose copy).
    cross = jax.lax.dot_general(
        z_mm, e_mm,
        dimension_numbers=(((1,), (1,)), ((), ())),
        preferred_element_type=jnp.float32,
    )                                                # [tb, tk] f32

    # ||z||^2 dropped (row-constant); 2x folded into e_sq in the wrapper.
    dists = e_sq - cross                             # [tb, tk] f32

    # Within-tile min / argmin with first-index tie-breaking.
    col = jax.lax.broadcasted_iota(jnp.int32, (tb, tk), 1)
    local_min = jnp.min(dists, axis=1, keepdims=True)                    # [tb, 1]
    local_idx = jnp.min(jnp.where(dists <= local_min, col, tk), axis=1)  # [tb]

    # Candidate codebook row via one-hot matmul against the ORIGINAL-precision tile.
    onehot = (local_idx[:, None] == col).astype(e.dtype)                 # [tb, tk]
    cand = jnp.dot(onehot, e, preferred_element_type=jnp.float32)        # [tb, D] f32

    # Running argmin across K tiles.  Strict '<' keeps the earliest tile on
    # exact ties (first-index tie-break is preserved across tiles).
    better = local_min < min_ref[...]
    min_ref[...] = jnp.where(better, local_min, min_ref[...])
    acc_ref[...] = jnp.where(better, cand, acc_ref[...])

    @pl.when(j == nk - 1)
    def _():
        z_q = acc_ref[...]
        zq_ref[...] = z_q.astype(zq_ref.dtype)
        # Per-batch-tile partial SSE; padded batch rows masked out.  The scalar
        # is broadcast into one legal lane-dense (8, 128) block per tile, each
        # grid step writes a disjoint block -> no accumulator race.
        row = i * tb + jax.lax.broadcasted_iota(jnp.int32, (tb, 1), 0)
        diff = jnp.where(row < batch, z_q - z.astype(jnp.float32), 0.0)
        part = jnp.sum(diff * diff).reshape(1, 1)
        loss_ref[...] = jnp.broadcast_to(part, (8, 128))


def vector_quantizer(z, embedding, beta=0.25, *, block_b=None, block_k=512,
                     mxu_dtype=None, vmem_limit_bytes=None):
    """Pallas VQ-VAE quantizer forward. Returns (z_quantized, quantization_loss)."""
    # TODO(synk): forward values only -- pallas_call is not differentiable, so the
    # straight-through estimator and the detach split between the codebook and
    # beta-weighted commitment loss terms need a custom_vjp wrapper for training.
    b, d = z.shape
    n_emb, d2 = embedding.shape
    assert d == d2, "z and codebook embedding_dim mismatch"

    dflt_tb, dflt_vmem = _device_defaults()
    if block_b is None:
        block_b = dflt_tb
    if vmem_limit_bytes is None:
        vmem_limit_bytes = dflt_vmem

    # Codebook in the activation dtype for the gather / (optionally bf16) matmul.
    e = embedding.astype(z.dtype)

    # --- batch tiling (rows stream through the pipeline; D stays native to
    #     avoid 128/D HBM traffic inflation for small embedding dims) ---
    tb = _round_up(min(block_b, _round_up(b, 8)), 8)
    bp = _round_up(b, tb)
    z_p = jnp.pad(z, ((0, bp - b), (0, 0))) if bp != b else z
    nb = bp // tb

    # --- codebook K tiling: lane-dense multiple of 128; padded rows guarded by
    #     a large ||e||^2 sentinel so they never win the argmin ---
    tk = _round_up(min(block_k, _round_up(n_emb, 128)), 128)
    kp = _round_up(n_emb, tk)
    e_p = jnp.pad(e, ((0, kp - n_emb), (0, 0))) if kp != n_emb else e
    nk = kp // tk

    # 0.5*||e||^2 hoisted to the wrapper (the 2x of the cross term is folded in).
    e_sq = 0.5 * jnp.sum(embedding.astype(jnp.float32) ** 2, axis=1)     # [K]
    if kp != n_emb:
        e_sq = jnp.concatenate(
            [e_sq, jnp.full((kp - n_emb,), 1e30, jnp.float32)])
    e_sq = e_sq[None, :]                                                 # [1, Kp]

    zq_p, loss_parts = pl.pallas_call(
        functools.partial(_vq_kernel, batch=b, mxu_dtype=mxu_dtype),
        grid=(nb, nk),
        in_specs=[
            pl.BlockSpec((tb, d), lambda i, j: (i, 0)),   # z tile (constant over j)
            pl.BlockSpec((tk, d), lambda i, j: (j, 0)),   # codebook K tile (streamed)
            pl.BlockSpec((1, tk), lambda i, j: (0, j)),   # 0.5*||e||^2 K tile
        ],
        out_specs=(
            pl.BlockSpec((tb, d), lambda i, j: (i, 0)),   # z_q tile (written at last j)
            pl.BlockSpec((8, 128), lambda i, j: (i, 0)),  # per-tile SSE partial
        ),
        out_shape=(
            jax.ShapeDtypeStruct((bp, d), z.dtype),
            jax.ShapeDtypeStruct((nb * 8, 128), jnp.float32),
        ),
        scratch_shapes=[
            pltpu.VMEM((tb, 1), jnp.float32),   # running min distance
            pltpu.VMEM((tb, d), jnp.float32),   # running best codebook row
        ],
        compiler_params=pltpu.CompilerParams(
            dimension_semantics=("parallel", "arbitrary"),
            vmem_limit_bytes=vmem_limit_bytes,
        ),
    )(z_p, e_p, e_sq)

    zq = zq_p[:b] if bp != b else zq_p
    loss_sum = jnp.sum(loss_parts.reshape(nb, 8, 128)[:, 0, 0])
    loss = (1.0 + beta) * loss_sum / (b * d)
    return zq, loss


def _reference(z, embedding, beta=0.25):
    """Pure-JAX reference mirroring the PyTorch forward (numerics only)."""
    zf = z.astype(jnp.float32)
    e = embedding.astype(jnp.float32)
    dists = (
        jnp.sum(zf**2, axis=1, keepdims=True)
        + jnp.sum(e**2, axis=1)
        - 2.0 * zf @ e.T
    )
    idx = jnp.argmin(dists, axis=1)
    z_q = e[idx]
    loss = (1.0 + beta) * jnp.mean((z_q - zf) ** 2)
    return z_q.astype(z.dtype), loss


if __name__ == "__main__":
    beta = 0.25
    key = jax.random.PRNGKey(0)
    k_emb1, k_z1, k_emb2, k_z2 = jax.random.split(key, 4)

    # ---- Case 1: module-scale shapes (K=16, D=32, B=50), exact f32 path ----
    K1, D1, B1 = 16, 32, 50
    emb1 = jax.random.uniform(
        k_emb1, (K1, D1), dtype=jnp.float32, minval=-1.0 / K1, maxval=1.0 / K1)
    z1 = jax.random.normal(k_z1, (B1, D1), dtype=jnp.float32)

    zq_ref1, loss_ref1 = _reference(z1, emb1, beta=beta)

    # Multi-batch-tile path (4 tiles of 16 rows, last one partially padded).
    zq1, loss1 = vector_quantizer(z1, emb1, beta=beta, block_b=16)
    zq1 = jax.block_until_ready(zq1)
    loss1 = jax.block_until_ready(loss1)
    assert zq1.shape == z1.shape
    assert jnp.allclose(zq1, zq_ref1, atol=1e-5, rtol=1e-5), "case1 z_q mismatch"
    assert jnp.allclose(loss1, loss_ref1, atol=1e-5, rtol=1e-5), "case1 loss mismatch"

    # Default (device-derived) tile sizes.
    zq1b, loss1b = vector_quantizer(z1, emb1, beta=beta)
    zq1b = jax.block_until_ready(zq1b)
    loss1b = jax.block_until_ready(loss1b)
    assert jnp.allclose(zq1b, zq_ref1, atol=1e-5, rtol=1e-5), "case1 default z_q mismatch"
    assert jnp.allclose(loss1b, loss_ref1, atol=1e-5, rtol=1e-5), "case1 default loss mismatch"

    # ---- Case 2: multi-tile in BOTH axes (K=300 -> 3 K-tiles incl. sentinel padding) ----
    K2, D2, B2 = 300, 32, 64
    emb2 = 0.1 * jax.random.normal(k_emb2, (K2, D2), dtype=jnp.float32)
    z2 = jax.random.normal(k_z2, (B2, D2), dtype=jnp.float32)

    zq_ref2, loss_ref2 = _reference(z2, emb2, beta=beta)
    zq2, loss2 = vector_quantizer(z2, emb2, beta=beta, block_b=16, block_k=128)
    zq2 = jax.block_until_ready(zq2)
    loss2 = jax.block_until_ready(loss2)
    assert jnp.allclose(zq2, zq_ref2, atol=1e-5, rtol=1e-5), "case2 z_q mismatch"
    assert jnp.allclose(loss2, loss_ref2, atol=1e-5, rtol=1e-5), "case2 loss mismatch"

    # ---- Case 3: bf16 MXU distance path (argmin may differ on exact float ties,
    #      so check self-consistency: rows are codebook rows, loss matches z_q) ----
    zq3, loss3 = vector_quantizer(
        z2, emb2, beta=beta, block_b=32, block_k=128, mxu_dtype=jnp.bfloat16)
    zq3 = jax.block_until_ready(zq3)
    loss3 = jax.block_until_ready(loss3)
    nearest_gap = jnp.min(
        jnp.max(jnp.abs(zq3[:, None, :] - emb2[None, :, :]), axis=-1), axis=-1)
    assert jnp.max(nearest_gap) < 1e-5, "case3 z_q rows are not codebook rows"
    loss3_check = (1.0 + beta) * jnp.mean((zq3 - z2) ** 2)
    assert jnp.allclose(loss3, loss3_check, atol=1e-6, rtol=1e-4), "case3 loss inconsistent"

    print("KERNEL_OK")
</pallas_src>

<mosaic_0001>
module attributes {stable_mosaic.version = 11 : i64} {
  func.func @_vq_kernel(%arg0: i32, %arg1: i32, %arg2: memref<16x32xf32, #tpu.memory_space<vmem>>, %arg3: memref<128x32xf32, #tpu.memory_space<vmem>>, %arg4: memref<1x128xf32, #tpu.memory_space<vmem>>, %arg5: memref<16x32xf32, #tpu.memory_space<vmem>>, %arg6: memref<8x128xf32, #tpu.memory_space<vmem>>, %arg7: memref<16x1xf32, #tpu.memory_space<vmem>>, %arg8: memref<16x32xf32, #tpu.memory_space<vmem>>) attributes {dimension_semantics = [#tpu.dimension_semantics<parallel>, #tpu.dimension_semantics<arbitrary>], iteration_bounds = array<i64: 4, 1>, scalar_prefetch = 0 : i64, scratch_operands = 2 : i64, tpu.core_type = #tpu.core_type<tc>, window_params = [{transform_indices = @transform_0, window_bounds = array<i64: 16, 32>}, {transform_indices = @transform_1, window_bounds = array<i64: 128, 32>}, {transform_indices = @transform_2, window_bounds = array<i64: 1, 128>}, {transform_indices = @transform_3, window_bounds = array<i64: 16, 32>}, {transform_indices = @transform_4, window_bounds = array<i64: 8, 128>}]} {
    %c0_i32 = arith.constant 0 : i32
    %0 = arith.cmpi eq, %arg1, %c0_i32 : i32
    %1 = arith.extui %0 : i1 to i32
    %c0_i32_0 = arith.constant 0 : i32
    %2 = arith.cmpi ne, %1, %c0_i32_0 : i32
    scf.if %2 {
      %cst_21 = arith.constant 0x7F800000 : f32
      %36 = vector.broadcast %cst_21 : f32 to vector<16x1xf32>
      %c0_22 = arith.constant 0 : index
      %c0_23 = arith.constant 0 : index
      %37 = vector.load %arg7[%c0_22, %c0_23] : memref<16x1xf32, #tpu.memory_space<vmem>>, vector<16x1xf32>
      tpu.vector_store %arg7[%c0_22, %c0_23], %36 {strides = array<i32>} : memref<16x1xf32, #tpu.memory_space<vmem>>, vector<16x1xf32>,
      %cst_24 = arith.constant 0.000000e+00 : f32
      %38 = vector.broadcast %cst_24 : f32 to vector<16x32xf32>
      %c0_25 = arith.constant 0 : index
      %c0_26 = arith.constant 0 : index
      %39 = vector.load %arg8[%c0_25, %c0_26] : memref<16x32xf32, #tpu.memory_space<vmem>>, vector<16x32xf32>
      tpu.vector_store %arg8[%c0_25, %c0_26], %38 {strides = array<i32>} : memref<16x32xf32, #tpu.memory_space<vmem>>, vector<16x32xf32>,
    } else {
    }
    %c0 = arith.constant 0 : index
    %c0_1 = arith.constant 0 : index
    %3 = vector.load %arg2[%c0, %c0_1] : memref<16x32xf32, #tpu.memory_space<vmem>>, vector<16x32xf32>
    %c0_2 = arith.constant 0 : index
    %c0_3 = arith.constant 0 : index
    %4 = vector.load %arg3[%c0_2, %c0_3] : memref<128x32xf32, #tpu.memory_space<vmem>>, vector<128x32xf32>
    %c0_4 = arith.constant 0 : index
    %c0_5 = arith.constant 0 : index
    %5 = vector.load %arg4[%c0_4, %c0_5] : memref<1x128xf32, #tpu.memory_space<vmem>>, vector<1x128xf32>
    %cst = arith.constant dense<0.000000e+00> : vector<16x128xf32>
    %6 = tpu.matmul %3, %4, %cst {dimension_numbers = #tpu.dot_dimension_numbers<[1], [1], [0], [0], [0, 0, 1, 0], [], []>} : vector<16x32xf32>, vector<128x32xf32>, vector<16x128xf32> -> vector<16x128xf32>
    %7 = vector.broadcast %5 : vector<1x128xf32> to vector<16x128xf32>
    %8 = arith.subf %7, %6 : vector<16x128xf32>
    %9 = tpu.iota {dimensions = array<i32: 1>} : vector<16x128xi32>
    %cst_6 = arith.constant dense<0x7F800000> : vector<16xf32>
    %10 = vector.multi_reduction <minimumf>, %8, %cst_6 [1] : vector<16x128xf32> to vector<16xf32>
    %11 = vector.shape_cast %10 : vector<16xf32> to vector<16x1xf32>
    %12 = vector.broadcast %11 : vector<16x1xf32> to vector<16x128xf32>
    %13 = arith.cmpf ole, %8, %12 : vector<16x128xf32>
    %c128_i32 = arith.constant 128 : i32
    %14 = vector.broadcast %c128_i32 : i32 to vector<16x128xi32>
    %15 = arith.select %13, %9, %14 : vector<16x128xi1>, vector<16x128xi32>
    %cst_7 = arith.constant dense<2147483647> : vector<16xi32>
    %16 = vector.multi_reduction <minsi>, %15, %cst_7 [1] : vector<16x128xi32> to vector<16xi32>
    %17 = vector.shape_cast %16 : vector<16xi32> to vector<16x1xi32>
    %18 = vector.broadcast %17 : vector<16x1xi32> to vector<16x128xi32>
    %19 = arith.cmpi eq, %18, %9 : vector<16x128xi32>
    %20 = arith.extui %19 : vector<16x128xi1> to vector<16x128xi32>
    %21 = arith.sitofp %20 : vector<16x128xi32> to vector<16x128xf32>
    %cst_8 = arith.constant dense<0.000000e+00> : vector<16x32xf32>
    %22 = tpu.matmul %21, %4, %cst_8 {dimension_numbers = #tpu.dot_dimension_numbers<[1], [0], [0], [1], [0, 0, 1, 1], [], []>} : vector<16x128xf32>, vector<128x32xf32>, vector<16x32xf32> -> vector<16x32xf32>
    %c0_9 = arith.constant 0 : index
    %c0_10 = arith.constant 0 : index
    %23 = vector.load %arg7[%c0_9, %c0_10] : memref<16x1xf32, #tpu.memory_space<vmem>>, vector<16x1xf32>
    %24 = arith.cmpf olt, %11, %23 : vector<16x1xf32>
    %c0_11 = arith.constant 0 : index
    %c0_12 = arith.constant 0 : index
    %25 = vector.load %arg7[%c0_11, %c0_12] : memref<16x1xf32, #tpu.memory_space<vmem>>, vector<16x1xf32>
    %26 = arith.select %24, %11, %25 : vector<16x1xi1>, vector<16x1xf32>
    %c0_13 = arith.constant 0 : index
    %c0_14 = arith.constant 0 : index
    %27 = vector.load %arg7[%c0_13, %c0_14] : memref<16x1xf32, #tpu.memory_space<vmem>>, vector<16x1xf32>
    tpu.vector_store %arg7[%c0_13, %c0_14], %26 {strides = array<i32>} : memref<16x1xf32, #tpu.memory_space<vmem>>, vector<16x1xf32>,
    %c0_15 = arith.constant 0 : index
    %c0_16 = arith.constant 0 : index
    %28 = vector.load %arg8[%c0_15, %c0_16] : memref<16x32xf32, #tpu.memory_space<vmem>>, vector<16x32xf32>
    %29 = vector.shape_cast %24 : vector<16x1xi1> to vector<16x1xi1>
    %30 = vector.broadcast %29 : vector<16x1xi1> to vector<16x32xi1>
    %31 = arith.select %30, %22, %28 : vector<16x32xi1>, vector<16x32xf32>
    %c0_17 = arith.constant 0 : index
    %c0_18 = arith.constant 0 : index
    %32 = vector.load %arg8[%c0_17, %c0_18] : memref<16x32xf32, #tpu.memory_space<vmem>>, vector<16x32xf32>
    tpu.vector_store %arg8[%c0_17, %c0_18], %31 {strides = array<i32>} : memref<16x32xf32, #tpu.memory_space<vmem>>, vector<16x32xf32>,
    %c0_i32_19 = arith.constant 0 : i32
    %33 = arith.cmpi eq, %arg1, %c0_i32_19 : i32
    %34 = arith.extui %33 : i1 to i32
    %c0_i32_20 = arith.constant 0 : i32
    %35 = arith.cmpi ne, %34, %c0_i32_20 : i32
    scf.if %35 {
      %c0_21 = arith.constant 0 : index
      %c0_22 = arith.constant 0 : index
      %36 = vector.load %arg8[%c0_21, %c0_22] : memref<16x32xf32, #tpu.memory_space<vmem>>, vector<16x32xf32>
      %c0_23 = arith.constant 0 : index
      %c0_24 = arith.constant 0 : index
      %37 = vector.load %arg5[%c0_23, %c0_24] : memref<16x32xf32, #tpu.memory_space<vmem>>, vector<16x32xf32>
      tpu.vector_store %arg5[%c0_23, %c0_24], %36 {strides = array<i32>} : memref<16x32xf32, #tpu.memory_space<vmem>>, vector<16x32xf32>,
      %c16_i32 = arith.constant 16 : i32
      %38 = arith.muli %arg0, %c16_i32 : i32
      %39 = tpu.iota {dimensions = array<i32: 0>} : vector<16x1xi32>
      %40 = vector.broadcast %38 : i32 to vector<16x1xi32>
      %41 = arith.addi %40, %39 : vector<16x1xi32>
      %c50_i32 = arith.constant 50 : i32
      %42 = vector.broadcast %c50_i32 : i32 to vector<16x1xi32>
      %43 = arith.cmpi slt, %41, %42 : vector<16x1xi32>
      %44 = arith.subf %36, %3 : vector<16x32xf32>
      %cst_25 = arith.constant 0.000000e+00 : f32
      %45 = vector.shape_cast %43 : vector<16x1xi1> to vector<16x1xi1>
      %46 = vector.broadcast %45 : vector<16x1xi1> to vector<16x32xi1>
      %47 = vector.broadcast %cst_25 : f32 to vector<16x32xf32>
      %48 = arith.select %46, %44, %47 : vector<16x32xi1>, vector<16x32xf32>
      %49 = arith.mulf %48, %48 : vector<16x32xf32>
      %50 = vector.shape_cast %49 : vector<16x32xf32> to vector<1x16x32xf32>
      %cst_26 = arith.constant dense<0.000000e+00> : vector<1xf32>
      %51 = vector.multi_reduction <add>, %50, %cst_26 [1, 2] : vector<1x16x32xf32> to vector<1xf32>
      %52 = vector.shape_cast %51 : vector<1xf32> to vector<1x1x1xf32>
      %53 = vector.extract %52[0, 0, 0] : f32 from vector<1x1x1xf32>
      %54 = vector.broadcast %53 : f32 to vector<1x1xf32>
      %55 = vector.shape_cast %54 : vector<1x1xf32> to vector<1x1xf32>
      %56 = vector.broadcast %55 : vector<1x1xf32> to vector<8x128xf32>
      %c0_27 = arith.constant 0 : index
      %c0_28 = arith.constant 0 : index
      %57 = vector.load %arg6[%c0_27, %c0_28] : memref<8x128xf32, #tpu.memory_space<vmem>>, vector<8x128xf32>
      tpu.vector_store %arg6[%c0_27, %c0_28], %56 {strides = array<i32>} : memref<8x128xf32, #tpu.memory_space<vmem>>, vector<8x128xf32>,
    } else {
    }
    return
  }
  func.func @transform_0(%arg0: i32, %arg1: i32) -> (i32, i32) {
    %c0_i32 = arith.constant 0 : i32
    %c0_i32_0 = arith.constant 0 : i32
    return %arg0, %c0_i32 : i32, i32
  }
  func.func @transform_1(%arg0: i32, %arg1: i32) -> (i32, i32) {
    %c0_i32 = arith.constant 0 : i32
    %c0_i32_0 = arith.constant 0 : i32
    return %arg1, %c0_i32 : i32, i32
  }
  func.func @transform_2(%arg0: i32, %arg1: i32) -> (i32, i32) {
    %c0_i32 = arith.constant 0 : i32
    %c0_i32_0 = arith.constant 0 : i32
    return %c0_i32, %arg1 : i32, i32
  }
  func.func @transform_3(%arg0: i32, %arg1: i32) -> (i32, i32) {
    %c0_i32 = arith.constant 0 : i32
    %c0_i32_0 = arith.constant 0 : i32
    return %arg0, %c0_i32 : i32, i32
  }
  func.func @transform_4(%arg0: i32, %arg1: i32) -> (i32, i32) {
    %c0_i32 = arith.constant 0 : i32
    %c0_i32_0 = arith.constant 0 : i32
    return %arg0, %c0_i32 : i32, i32
  }
}

</mosaic_0001>

<llo_original>
// kernel: tpu_custom_call.1
$region0: #{tpu_custom_call.1}
  #allocation0 [shape = 'u32[]', space=smem, size = 0x4, offset = 0x4, fixed_abs, tag = 'smem constant byte address 0x4 - core index']
  #allocation1 [shape = 'u32[144,128]{1,0:T(1,128)}', space=vmem, size = 0x12000, scoped, tag = 'internal scratch']
  #allocation2 [shape = 'f32[16,1]{1,0:T(8,128)}', space=vmem, size = 0x2000, scoped, tag = 'scratch operand']
  #allocation3 [shape = 'f32[16,32]{1,0:T(8,128)}', space=vmem, size = 0x2000, scoped, tag = 'scratch operand']
  %s0 = inlined_call_operand.hbm [shape: f32[64,32], index: 0, kind: input, shape index: {}]
  %s1 = inlined_call_operand.hbm [shape: f32[128,32], index: 1, kind: input, shape index: {}]
  %s2 = inlined_call_operand.hbm [shape: f32[1,128], index: 2, kind: input, shape index: {}]
  %s3 = inlined_call_operand.hbm [shape: f32[64,32], index: 3, kind: output, shape index: {0}]
  %s4 = inlined_call_operand.hbm [shape: f32[32,128], index: 4, kind: output, shape index: {1}]
  %5 = xla_tuple %s3, %s4
  %s6 = sld [smem:[#allocation0]]
  $region73: #{tpu_custom_call.1} parent=0
    _
  %s8 = ssub.s32 1, %s6
  %s9 = scalar_select 0, %s8, %s6
  $region1: #{tpu_custom_call.1} parent=0
    #allocation4 [shape = 'u8[16384]{0}', space=vmem, size = 0x4000, scoped, tag = 'input window, operand 0']
    #allocation5 [shape = 's32[2]{0}', space=sflag, size = 0x8, scoped, tag = 'scoped memory for tpu_custom_call.1']
    #allocation6 [shape = 's32[2]{0}', space=sflag, size = 0x8, scoped, tag = 'scoped memory for tpu_custom_call.1']
    #allocation7 [shape = 'u8[65536]{0}', space=vmem, size = 0x10000, scoped, tag = 'input window, operand 1, single buffered']
    #allocation8 [shape = 's32[1]{0}', space=sflag, size = 0x4, scoped, tag = 'scoped memory for tpu_custom_call.1']
    #allocation9 [shape = 'u8[512]{0}', space=vmem, size = 0x400, scoped, tag = 'input window, operand 2, single buffered']
    #allocation10 [shape = 'u8[16384]{0}', space=vmem, size = 0x4000, scoped, tag = 'output window, operand 0']
    #allocation11 [shape = 'u8[8192]{0}', space=vmem, size = 0x2000, scoped, tag = 'output window, operand 1']
    #allocation12 [shape = 's32[2]{0}', space=sflag, size = 0x8, scoped, tag = 'scoped memory for tpu_custom_call.1']
    %10 = vsyncpa [#allocation5], 0
    %s11 = scalar_lea.sflag [#allocation5], 1
    %12 = vsyncpa %s11, 0
    %13 = vsyncpa [#allocation8], 0
    %14 = vsyncpa [#allocation6], 0
    %s15 = scalar_lea.sflag [#allocation6], 1
    %16 = vsyncpa %s15, 0
    %17 = vsyncpa [#allocation12], 0
    %s18 = scalar_lea.sflag [#allocation12], 1
    %19 = vsyncpa %s18, 0
    loop: start=0, step=1, limit=6
    $region2: #{tpu_custom_call.1} parent=1 // loop_pre_header
      _
    $region3: #{tpu_custom_call.1} parent=1 // loop_header
      %s21 = sphi 0, %s25
      %p22 = scmp.ge.s32.totalorder %s21, 6
      %s28 = sphi 0, %s40
      %s29 = sphi 0, %s36
      %s30 = sphi 0, %s28
      %s31 = sphi 0, %s29
      %s32 = sphi 0, %s30
      %s33 = sphi 0, %s31
      %s43 = sphi 0, %s45
      %s46 = sphi 0, %s43
      %s47 = sphi 0, %s46
      %s63 = sphi 0, %s47
      %s69 = sphi 0, %s71
      %s72 = sphi 0, %s69
      %s73 = sphi 0, %s72
      %s89 = sphi 0, %s73
      %s95 = sphi 0, %s97
      %s98 = sphi 0, %s95
      %s99 = sphi 0, %s98
      %s115 = sphi 0, %s99
      %s121 = sphi 0, %s123
      %s124 = sphi 0, %s121
      %s125 = sphi 0, %s124
      %s141 = sphi 0, %s125
      %s147 = sphi 0, %s149
      %s150 = sphi 0, %s147
      %s151 = sphi 0, %s150
      %s167 = sphi 0, %s151
    $region4: #{tpu_custom_call.1} parent=1 // loop_header_branch
      %24 = sbr.rel (%p22) target = $region8
    $region5: #{tpu_custom_call.1} parent=1 // loop_body
      %s26 = ssub.s32 %s21, 1
      %s27 = ssub.s32 %s21, 2
      %s34 = sadd.s32 1, %s29
      %p35 = scmp.ge.s32.totalorder %s34, 1
      %s36 = scalar_select %p35, 0, %s34
      %s37 = sadd.s32 1, %s28
      %s38 = scalar_select %p35, %s37, %s28
      %p39 = scmp.ge.s32.totalorder %s38, 4
      %s40 = scalar_select %p39, 0, %s38
      %s41 = ssub.s32 %s28, %s40
      %p42 = scmp.eq.s32.totalorder %s41, 0
      %s44 = sadd.s32 %s43, 1
      %s45 = scalar_select %p42, %s43, %s44
      %p48 = pneg %p42
      %p49 = scmp.eq.s32.totalorder %s21, 3
      %p50 = por %p48, %p49
      %p51 = scmp.ne.s32.totalorder %s43, %s46
      %p52 = scmp.eq.s32.totalorder %s21, 0
      %p53 = por %p51, %p52
      %p54 = scmp.ne.s32.totalorder %s43, %s46
      %p55 = scmp.eq.s32.totalorder %s26, 3
      %p56 = por %p54, %p55
      %p57 = scmp.ne.s32.totalorder %s46, %s47
      %p58 = scmp.eq.s32.totalorder %s26, 0
      %p59 = por %p57, %p58
      %p60 = scmp.ne.s32.totalorder %s46, %s47
      %p61 = scmp.eq.s32.totalorder %s27, 3
      %p62 = por %p60, %p61
      %p64 = scmp.ne.s32.totalorder %s47, %s63
      %p65 = scmp.eq.s32.totalorder %s27, 0
      %p66 = por %p64, %p65
      %s67 = ssub.s32 %s29, %s36
      %p68 = scmp.eq.s32.totalorder %s67, 0
      %s70 = sadd.s32 %s69, 1
      %s71 = scalar_select %p68, %s69, %s70
      %p74 = pneg %p68
      %p75 = scmp.eq.s32.totalorder %s21, 3
      %p76 = por %p74, %p75
      %p77 = scmp.ne.s32.totalorder %s69, %s72
      %p78 = scmp.eq.s32.totalorder %s21, 0
      %p79 = por %p77, %p78
      %p80 = scmp.ne.s32.totalorder %s69, %s72
      %p81 = scmp.eq.s32.totalorder %s26, 3
      %p82 = por %p80, %p81
      %p83 = scmp.ne.s32.totalorder %s72, %s73
      %p84 = scmp.eq.s32.totalorder %s26, 0
      %p85 = por %p83, %p84
      %p86 = scmp.ne.s32.totalorder %s72, %s73
      %p87 = scmp.eq.s32.totalorder %s27, 3
      %p88 = por %p86, %p87
      %p90 = scmp.ne.s32.totalorder %s73, %s89
      %p91 = scmp.eq.s32.totalorder %s27, 0
      %p92 = por %p90, %p91
      %s93 = ssub.s32 %s29, %s36
      %p94 = scmp.eq.s32.totalorder %s93, 0
      %s96 = sadd.s32 %s95, 1
      %s97 = scalar_select %p94, %s95, %s96
      %p100 = pneg %p94
      %p101 = scmp.eq.s32.totalorder %s21, 3
      %p102 = por %p100, %p101
      %p103 = scmp.ne.s32.totalorder %s95, %s98
      %p104 = scmp.eq.s32.totalorder %s21, 0
      %p105 = por %p103, %p104
      %p106 = scmp.ne.s32.totalorder %s95, %s98
      %p107 = scmp.eq.s32.totalorder %s26, 3
      %p108 = por %p106, %p107
      %p109 = scmp.ne.s32.totalorder %s98, %s99
      %p110 = scmp.eq.s32.totalorder %s26, 0
      %p111 = por %p109, %p110
      %p112 = scmp.ne.s32.totalorder %s98, %s99
      %p113 = scmp.eq.s32.totalorder %s27, 3
      %p114 = por %p112, %p113
      %p116 = scmp.ne.s32.totalorder %s99, %s115
      %p117 = scmp.eq.s32.totalorder %s27, 0
      %p118 = por %p116, %p117
      %s119 = ssub.s32 %s28, %s40
      %p120 = scmp.eq.s32.totalorder %s119, 0
      %s122 = sadd.s32 %s121, 1
      %s123 = scalar_select %p120, %s121, %s122
      %p126 = pneg %p120
      %p127 = scmp.eq.s32.totalorder %s21, 3
      %p128 = por %p126, %p127
      %p129 = scmp.ne.s32.totalorder %s121, %s124
      %p130 = scmp.eq.s32.totalorder %s21, 0
      %p131 = por %p129, %p130
      %p132 = scmp.ne.s32.totalorder %s121, %s124
      %p133 = scmp.eq.s32.totalorder %s26, 3
      %p134 = por %p132, %p133
      %p135 = scmp.ne.s32.totalorder %s124, %s125
      %p136 = scmp.eq.s32.totalorder %s26, 0
      %p137 = por %p135, %p136
      %p138 = scmp.ne.s32.totalorder %s124, %s125
      %p139 = scmp.eq.s32.totalorder %s27, 3
      %p140 = por %p138, %p139
      %p142 = scmp.ne.s32.totalorder %s125, %s141
      %p143 = scmp.eq.s32.totalorder %s27, 0
      %p144 = por %p142, %p143
      %s145 = ssub.s32 %s28, %s40
      %p146 = scmp.eq.s32.totalorder %s145, 0
      %s148 = sadd.s32 %s147, 1
      %s149 = scalar_select %p146, %s147, %s148
      %p152 = pneg %p146
      %p153 = scmp.eq.s32.totalorder %s21, 3
      %p154 = por %p152, %p153
      %p155 = scmp.ne.s32.totalorder %s147, %s150
      %p156 = scmp.eq.s32.totalorder %s21, 0
      %p157 = por %p155, %p156
      %p158 = scmp.ne.s32.totalorder %s147, %s150
      %p159 = scmp.eq.s32.totalorder %s26, 3
      %p160 = por %p158, %p159
      %p161 = scmp.ne.s32.totalorder %s150, %s151
      %p162 = scmp.eq.s32.totalorder %s26, 0
      %p163 = por %p161, %p162
      %p164 = scmp.ne.s32.totalorder %s150, %s151
      %p165 = scmp.eq.s32.totalorder %s27, 3
      %p166 = por %p164, %p165
      %p168 = scmp.ne.s32.totalorder %s151, %s167
      %p169 = scmp.eq.s32.totalorder %s27, 0
      %p170 = por %p168, %p169
      %p171 = scmp.le.s32.totalorder 1, %s21
      %p172 = scmp.lt.s32.totalorder %s21, 5
      %p173 = pnand %p171, %p172
      %p174 = pneg %p173
      // Predicated region
      $region9: #{tpu_custom_call.1} parent=5 // pred_check
        _
      $region10: #{tpu_custom_call.1} parent=5 // pred_check_branch
        %176 = sbr.rel (%p173) target = $region12
      $region11: #{tpu_custom_call.1} parent=5 // pred_region
        %s177 = ssub.s32 %s21, 1
        // Predicated region
        $region13: #{tpu_custom_call.1} parent=11 // pred_check
          %p178 = pneg %p85
        $region14: #{tpu_custom_call.1} parent=11 // pred_check_branch
          %180 = sbr.rel (%p178) target = $region16
        $region15: #{tpu_custom_call.1} parent=11 // pred_region
          %s181 = smul.u32 16, %s31
          %s183 = ssub.s32 2048, 2048
          %184 = vsyncadd [#allocation8], %s183
          %s185 = smul.addr %s181, 128
          %s186 = scalar_lea.hbm %s1, %s185
          %s187 = sshll.u32 [#allocation7], 4
          %s188 = int_to_ptr.vmem [resolvable:$true] %s187
          %193 = dma.hbm_to_vmem [thread:$0]  %s186, 2048, %s188, [#allocation8], 128, 128, 8
        $region16: #{tpu_custom_call.1} parent=11 // pred_fallthru
          _
        // Predicated region
        $region17: #{tpu_custom_call.1} parent=11 // pred_check
          %p194 = pneg %p111
        $region18: #{tpu_custom_call.1} parent=11 // pred_check_branch
          %196 = sbr.rel (%p194) target = $region20
        $region19: #{tpu_custom_call.1} parent=11 // pred_region
          %s198 = ssub.s32 16, 16
          %199 = vsyncadd [#allocation8], %s198
          %s200 = smul.addr %s31, 16
          %s201 = scalar_lea.hbm %s2, %s200
          %s203 = sshll.u32 [#allocation9], 4
          %s204 = int_to_ptr.vmem [resolvable:$true] %s203
          %206 = dma.hbm_to_vmem [thread:$0]  %s201, 16, %s204, [#allocation8]
        $region20: #{tpu_custom_call.1} parent=11 // pred_fallthru
          _
      $region12: #{tpu_custom_call.1} parent=5 // pred_fallthru
        _
      %p207 = scmp.lt.s32.totalorder %s21, 4
      // Predicated region
      $region21: #{tpu_custom_call.1} parent=5 // pred_check
        %p208 = pneg %p207
      $region22: #{tpu_custom_call.1} parent=5 // pred_check_branch
        %210 = sbr.rel (%p208) target = $region24
      $region23: #{tpu_custom_call.1} parent=5 // pred_region
        // Predicated region
        $region25: #{tpu_custom_call.1} parent=23 // pred_check
          %p211 = pneg %p53
        $region26: #{tpu_custom_call.1} parent=23 // pred_check_branch
          %213 = sbr.rel (%p211) target = $region28
        $region27: #{tpu_custom_call.1} parent=23 // pred_region
          %s214 = sand.u32 %s43, 1
          %s215 = scalar_lea.sflag [#allocation5], %s214
          %s216 = sand.u32 %s43, 1
          %s217 = smul.addr %s216, 16
          %s218 = scalar_lea.vmem [#allocation4], %s217
          %s219 = smul.u32 2, %s28
          %s221 = ssub.s32 256, 256
          %222 = vsyncadd %s215, %s221
          %s223 = smul.addr %s219, 128
          %s224 = scalar_lea.hbm %s0, %s223
          %s225 = sshll.u32 %s218, 4
          %s226 = int_to_ptr.vmem [resolvable:$true] %s225
          %231 = dma.hbm_to_vmem [thread:$0]  %s224, 256, %s226, %s215, 128, 128, 8
        $region28: #{tpu_custom_call.1} parent=23 // pred_fallthru
          _
      $region24: #{tpu_custom_call.1} parent=5 // pred_fallthru
        _
      %p232 = scmp.le.s32.totalorder 1, %s21
      %p233 = scmp.lt.s32.totalorder %s21, 5
      %p234 = pnand %p232, %p233
      %p235 = pneg %p234
      // Predicated region
      $region29: #{tpu_custom_call.1} parent=5 // pred_check
        _
      $region30: #{tpu_custom_call.1} parent=5 // pred_check_branch
        %237 = sbr.rel (%p234) target = $region32
      $region31: #{tpu_custom_call.1} parent=5 // pred_region
        %s238 = ssub.s32 %s21, 1
        %s239 = sand.u32 %s46, 1
        %s240 = scalar_lea.sflag [#allocation5], %s239
        %s241 = sand.u32 %s46, 1
        %s242 = smul.addr %s241, 16
        %s243 = scalar_lea.vmem [#allocation4], %s242
        // Predicated region
        $region33: #{tpu_custom_call.1} parent=31 // pred_check
          %p244 = pneg %p59
        $region34: #{tpu_custom_call.1} parent=31 // pred_check_branch
          %246 = sbr.rel (%p244) target = $region36
        $region35: #{tpu_custom_call.1} parent=31 // pred_region
          %247 = dma.done %s240, 256
        $region36: #{tpu_custom_call.1} parent=31 // pred_fallthru
          _
        // Predicated region
        $region37: #{tpu_custom_call.1} parent=31 // pred_check
          %p248 = pneg %p85
        $region38: #{tpu_custom_call.1} parent=31 // pred_check_branch
          %250 = sbr.rel (%p248) target = $region40
        $region39: #{tpu_custom_call.1} parent=31 // pred_region
          %251 = dma.done [#allocation8], 2048
        $region40: #{tpu_custom_call.1} parent=31 // pred_fallthru
          _
        // Predicated region
        $region41: #{tpu_custom_call.1} parent=31 // pred_check
          %p252 = pneg %p111
        $region42: #{tpu_custom_call.1} parent=31 // pred_check_branch
          %254 = sbr.rel (%p252) target = $region44
        $region43: #{tpu_custom_call.1} parent=31 // pred_region
          %255 = dma.done [#allocation8], 16
        $region44: #{tpu_custom_call.1} parent=31 // pred_fallthru
          _
        %s256 = sand.u32 %s46, 1
        %s257 = scalar_lea.sflag [#allocation5], %s256
        %s258 = sand.u32 %s46, 1
        %s259 = smul.addr %s258, 16
        %s260 = scalar_lea.vmem [#allocation4], %s259
        %p261 = pneg %p59
        %p262 = pneg %p56
        %p263 = pneg %p85
        %p264 = pneg %p82
        %p265 = pneg %p111
        %p266 = pneg %p108
        %p267 = pneg %p137
        %p268 = pneg %p134
        %s269 = sand.u32 %s124, 1
        %s270 = scalar_lea.sflag [#allocation6], %s269
        %s271 = sand.u32 %s124, 1
        %s272 = smul.addr %s271, 16
        %s273 = scalar_lea.vmem [#allocation10], %s272
        %p274 = pneg %p163
        %p275 = pneg %p160
        %s276 = sand.u32 %s150, 1
        %s277 = scalar_lea.sflag [#allocation12], %s276
        %s278 = sand.u32 %s150, 1
        %s279 = smul.addr %s278, 8
        %s280 = scalar_lea.vmem [#allocation11], %s279
        %s281 = smul.u32 2, %s30
        %s282 = smul.u32 16, %s31
        %s283 = smul.u32 2, %s30
        %p284 = scmp.eq.s32.totalorder %s31, 0
        // Predicated region
        $region45: #{tpu_custom_call.1} parent=31 // pred_check
          %p285 = pneg %p284
        $region46: #{tpu_custom_call.1} parent=31 // pred_check_branch
          %287 = sbr.rel (%p285) target = $region48
        $region47: #{tpu_custom_call.1} parent=31 // pred_region
          %vm288 = vcmask 7168
          %289 = vst.msk [vmem:[#allocation2] sm:$0xff] %vm288, inf
          %290 = vst.msk [vmem:[#allocation2 + $0x8] sm:$0xff] %vm288, inf
          %vm291 = vcmask 261120
          %292 = vst.msk [vmem:[#allocation3] sm:$0xff] %vm291, 0.0
          %293 = vst.msk [vmem:[#allocation3 + $0x8] sm:$0xff] %vm291, 0.0
        $region48: #{tpu_custom_call.1} parent=31 // pred_fallthru
          _
        %v294 = vld [vmem:[%s243] sm:$0xff]
        %v295 = vld [vmem:[%s243 + $0x8] sm:$0xff]
        %v296 = vld [vmem:[#allocation7] sm:$0xff]
        %v297 = vld [vmem:[#allocation7 + $0x8] sm:$0xff]
        %v298 = vld [vmem:[#allocation7 + $0x10] sm:$0xff]
        %v299 = vld [vmem:[#allocation7 + $0x18] sm:$0xff]
        %v300 = vld [vmem:[#allocation7 + $0x20] sm:$0xff]
        %v301 = vld [vmem:[#allocation7 + $0x28] sm:$0xff]
        %v302 = vld [vmem:[#allocation7 + $0x30] sm:$0xff]
        %v303 = vld [vmem:[#allocation7 + $0x38] sm:$0xff]
        %v304 = vld [vmem:[#allocation7 + $0x40] sm:$0xff]
        %v305 = vld [vmem:[#allocation7 + $0x48] sm:$0xff]
        %v306 = vld [vmem:[#allocation7 + $0x50] sm:$0xff]
        %v307 = vld [vmem:[#allocation7 + $0x58] sm:$0xff]
        %v308 = vld [vmem:[#allocation7 + $0x60] sm:$0xff]
        %v309 = vld [vmem:[#allocation7 + $0x68] sm:$0xff]
        %v310 = vld [vmem:[#allocation7 + $0x70] sm:$0xff]
        %v311 = vld [vmem:[#allocation7 + $0x78] sm:$0xff]
        %v312 = vld [vmem:[#allocation9] sm:$0x1]
        %vm313 = vcmask 261120
        %v315 = vsel %vm313, %v294, 0
        %v318 = vsel %vm313, %v295, 0
        %v321 = vsel %vm313, %v296, 0
        %v324 = vsel %vm313, %v297, 0
        %v327 = vsel %vm313, %v298, 0
        %v330 = vsel %vm313, %v299, 0
        %v333 = vsel %vm313, %v300, 0
        %v336 = vsel %vm313, %v301, 0
        %v339 = vsel %vm313, %v302, 0
        %v342 = vsel %vm313, %v303, 0
        %v345 = vsel %vm313, %v304, 0
        %v348 = vsel %vm313, %v305, 0
        %v351 = vsel %vm313, %v306, 0
        %v354 = vsel %vm313, %v307, 0
        %v357 = vsel %vm313, %v308, 0
        %v360 = vsel %vm313, %v309, 0
        %v363 = vsel %vm313, %v310, 0
        %v366 = vsel %vm313, %v311, 0
        %368 = vmatprep.subr.mxu0 0.0
        %369 = vmatpush1.xpose.msra.mxu0 %v321
        %370 = vmatprep.subr.mxu0 0.0
        %371 = vmatpush1.xpose.msra.mxu0 %v324
        %372 = vmatprep.subr.mxu0 0.0
        %373 = vmatpush1.xpose.msra.mxu0 %v327
        %374 = vmatprep.subr.mxu0 0.0
        %375 = vmatpush1.xpose.msra.mxu0 %v330
        %376 = vmatprep.subr.mxu0 0.0
        %377 = vmatpush1.xpose.msra.mxu0 %v333
        %378 = vmatprep.subr.mxu0 0.0
        %379 = vmatpush1.xpose.msra.mxu0 %v336
        %380 = vmatprep.subr.mxu0 0.0
        %381 = vmatpush1.xpose.msra.mxu0 %v339
        %382 = vmatprep.subr.mxu0 0.0
        %383 = vmatpush1.xpose.msra.mxu0 %v342
        %384 = vmatprep.subr.mxu0 0.0
        %385 = vmatpush1.xpose.msra.mxu0 %v345
        %386 = vmatprep.subr.mxu0 0.0
        %387 = vmatpush1.xpose.msra.mxu0 %v348
        %388 = vmatprep.subr.mxu0 0.0
        %389 = vmatpush1.xpose.msra.mxu0 %v351
        %390 = vmatprep.subr.mxu0 0.0
        %391 = vmatpush1.xpose.msra.mxu0 %v354
        %392 = vmatprep.subr.mxu0 0.0
        %393 = vmatpush1.xpose.msra.mxu0 %v357
        %394 = vmatprep.subr.mxu0 0.0
        %395 = vmatpush1.xpose.msra.mxu0 %v360
        %396 = vmatprep.subr.mxu0 0.0
        %397 = vmatpush1.xpose.msra.mxu0 %v363
        %398 = vmatprep.subr.mxu0 0.0
        %399 = vmatpush1.xpose.msra.mxu0 %v366
        %400 = vmatprep.subr.mxu0 0.0
        %401 = vmatpush1.xpose.msra.mxu0 0.0
        %402 = vmatprep.subr.mxu0 0.0
        %403 = vmatpush1.xpose.msra.mxu0 0.0
        %404 = vmatprep.subr.mxu0 0.0
        %405 = vmatpush1.xpose.msra.mxu0 0.0
        %406 = vmatprep.subr.mxu0 0.0
        %407 = vmatpush1.xpose.msra.mxu0 0.0
        %408 = vmatprep.subr.mxu0 0.0
        %409 = vmatpush1.xpose.msra.mxu0 0.0
        %410 = vmatprep.subr.mxu0 0.0
        %411 = vmatpush1.xpose.msra.mxu0 0.0
        %412 = vmatprep.subr.mxu0 0.0
        %413 = vmatpush1.xpose.msra.mxu0 0.0
        %414 = vmatprep.subr.mxu0 0.0
        %415 = vmatpush1.xpose.msra.mxu0 0.0
        %416 = vmatprep.subr.mxu0 0.0
        %417 = vmatpush1.xpose.msra.mxu0 0.0
        %418 = vmatprep.subr.mxu0 0.0
        %419 = vmatpush1.xpose.msra.mxu0 0.0
        %420 = vmatprep.subr.mxu0 0.0
        %421 = vmatpush1.xpose.msra.mxu0 0.0
        %422 = vmatprep.subr.mxu0 0.0
        %423 = vmatpush1.xpose.msra.mxu0 0.0
        %424 = vmatprep.subr.mxu0 0.0
        %425 = vmatpush1.xpose.msra.mxu0 0.0
        %426 = vmatprep.subr.mxu0 0.0
        %427 = vmatpush1.xpose.msra.mxu0 0.0
        %428 = vmatprep.subr.mxu0 0.0
        %429 = vmatpush1.xpose.msra.mxu0 0.0
        %430 = vmatprep.subr.mxu0 0.0
        %431 = vmatpush1.xpose.msra.mxu0 0.0
        %432 = vmatprep.mubr.f32.mxu0 0.0
        %433 = vmatmul.mubr.f32.gmra.mrb[0].mxu0 %v315
        %v434 = vpop.f32.mrb[0].mxu0
        %v435 = vadd.f32 0.0, %v434
        %v436 = vpop.f32.mrb[0].mxu0
        %437 = vmatprep.mubr.f32.mxu0 0.0
        %438 = vmatmul.mubr.f32.gmra.mrb[0].mxu0 %v318
        %v439 = vpop.f32.mrb[0].mxu0
        %v440 = vadd.f32 0.0, %v439
        %v441 = vpop.f32.mrb[0].mxu0
        %442 = vdwg.mxu0
        %v444 = vlaneseq
        %v445 = vshrl.u32 %v444, 7
        %v446 = vsub.s32 0, %v445
        %v447 = vrot.slane %v312, %v446
        %v449 = vsub.f32 %v447, %v435
        %v450 = vsub.f32 %v447, %v440
        %v451 = vlaneseq
        %v452 = vand.u32 %v451, 127
        %453 = vmin.xlane.f32.xlu0 %v449
        %v454 = vpop.xlane.xlu0 %453
        %455 = vmin.xlane.f32.xlu0 %v450
        %v456 = vpop.xlane.xlu0 %455
        %vm457 = vcmp.le.f32.partialorder %v449, %v454
        %vm458 = vcmp.le.f32.partialorder %v450, %v456
        %v459 = vsel %vm457, %v452, 128
        %v460 = vsel %vm458, %v452, 128
        %v461 = vand.u32 %v459, 65535
        %v462 = vshra.s32 %v459, 16
        %v463 = vcvt.s32.f32 %v461
        %v464 = vcvt.s32.f32 %v462
        %465 = vmin.xlane.f32.xlu0 %v464
        %v466 = vpop.xlane.xlu0 %465
        %vm467 = vcmp.eq.f32.partialorder %v464, %v466
        %v468 = vsel %vm467, %v463, inf
        %469 = vmin.xlane.f32.xlu0 %v468
        %v470 = vpop.xlane.xlu0 %469
        %v471 = vcvt.f32.s32 %v470
        %v472 = vcvt.f32.s32 %v466
        %v473 = vshll.u32 %v472, 16
        %v474 = vadd.s32 %v473, %v471
        %v475 = vand.u32 %v460, 65535
        %v476 = vshra.s32 %v460, 16
        %v477 = vcvt.s32.f32 %v475
        %v478 = vcvt.s32.f32 %v476
        %479 = vmin.xlane.f32.xlu0 %v478
        %v480 = vpop.xlane.xlu0 %479
        %vm481 = vcmp.eq.f32.partialorder %v478, %v480
        %v482 = vsel %vm481, %v477, inf
        %483 = vmin.xlane.f32.xlu0 %v482
        %v484 = vpop.xlane.xlu0 %483
        %v485 = vcvt.f32.s32 %v484
        %v486 = vcvt.f32.s32 %v480
        %v487 = vshll.u32 %v486, 16
        %v488 = vadd.s32 %v487, %v485
        %vm489 = vcmp.eq.s32.totalorder %v474, %v452
        %vm490 = vcmp.eq.s32.totalorder %v488, %v452
        %v491 = vsel %vm489, 1, 0
        %v492 = vsel %vm490, 1, 0
        %v493 = vcvt.s32.f32 %v491
        %v494 = vcvt.s32.f32 %v492
        %495 = vmatprep.subr.mxu0 0.0
        %496 = vmatpush1.msra.mxu0 %v296
        %497 = vmatprep.subr.mxu0 0.0
        %498 = vmatpush1.msra.mxu0 %v297
        %499 = vmatprep.subr.mxu0 0.0
        %500 = vmatpush1.msra.mxu0 %v298
        %501 = vmatprep.subr.mxu0 0.0
        %502 = vmatpush1.msra.mxu0 %v299
        %503 = vmatprep.subr.mxu0 0.0
        %504 = vmatpush1.msra.mxu0 %v300
        %505 = vmatprep.subr.mxu0 0.0
        %506 = vmatpush1.msra.mxu0 %v301
        %507 = vmatprep.subr.mxu0 0.0
        %508 = vmatpush1.msra.mxu0 %v302
        %509 = vmatprep.subr.mxu0 0.0
        %510 = vmatpush1.msra.mxu0 %v303
        %511 = vmatprep.subr.mxu0 0.0
        %512 = vmatpush1.msra.mxu0 %v304
        %513 = vmatprep.subr.mxu0 0.0
        %514 = vmatpush1.msra.mxu0 %v305
        %515 = vmatprep.subr.mxu0 0.0
        %516 = vmatpush1.msra.mxu0 %v306
        %517 = vmatprep.subr.mxu0 0.0
        %518 = vmatpush1.msra.mxu0 %v307
        %519 = vmatprep.subr.mxu0 0.0
        %520 = vmatpush1.msra.mxu0 %v308
        %521 = vmatprep.subr.mxu0 0.0
        %522 = vmatpush1.msra.mxu0 %v309
        %523 = vmatprep.subr.mxu0 0.0
        %524 = vmatpush1.msra.mxu0 %v310
        %525 = vmatprep.subr.mxu0 0.0
        %526 = vmatpush1.msra.mxu0 %v311
        %527 = vmatprep.subr.mxu0 0.0
        %528 = vmatpush1.msra.mxu0 0.0
        %529 = vmatprep.subr.mxu0 0.0
        %530 = vmatpush1.msra.mxu0 0.0
        %531 = vmatprep.subr.mxu0 0.0
        %532 = vmatpush1.msra.mxu0 0.0
        %533 = vmatprep.subr.mxu0 0.0
        %534 = vmatpush1.msra.mxu0 0.0
        %535 = vmatprep.subr.mxu0 0.0
        %536 = vmatpush1.msra.mxu0 0.0
        %537 = vmatprep.subr.mxu0 0.0
        %538 = vmatpush1.msra.mxu0 0.0
        %539 = vmatprep.subr.mxu0 0.0
        %540 = vmatpush1.msra.mxu0 0.0
        %541 = vmatprep.subr.mxu0 0.0
        %542 = vmatpush1.msra.mxu0 0.0
        %543 = vmatprep.subr.mxu0 0.0
        %544 = vmatpush1.msra.mxu0 0.0
        %545 = vmatprep.subr.mxu0 0.0
        %546 = vmatpush1.msra.mxu0 0.0
        %547 = vmatprep.subr.mxu0 0.0
        %548 = vmatpush1.msra.mxu0 0.0
        %549 = vmatprep.subr.mxu0 0.0
        %550 = vmatpush1.msra.mxu0 0.0
        %551 = vmatprep.subr.mxu0 0.0
        %552 = vmatpush1.msra.mxu0 0.0
        %553 = vmatprep.subr.mxu0 0.0
        %554 = vmatpush1.msra.mxu0 0.0
        %555 = vmatprep.subr.mxu0 0.0
        %556 = vmatpush1.msra.mxu0 0.0
        %557 = vmatprep.subr.mxu0 0.0
        %558 = vmatpush1.msra.mxu0 0.0
        %559 = vmatprep.mubr.f32.mxu0 0.0
        %560 = vmatmul.mubr.f32.gmra.mrb[0].mxu0 %v493
        %v561 = vpop.f32.mrb[0].mxu0
        %v562 = vadd.f32 0.0, %v561
        %v563 = vpop.f32.mrb[0].mxu0
        %564 = vmatprep.mubr.f32.mxu0 0.0
        %565 = vmatmul.mubr.f32.gmra.mrb[0].mxu0 %v494
        %v566 = vpop.f32.mrb[0].mxu0
        %v567 = vadd.f32 0.0, %v566
        %v568 = vpop.f32.mrb[0].mxu0
        %569 = vdwg.mxu0
        %v570 = vld [vmem:[#allocation2] sm:$0xff]
        %v571 = vld [vmem:[#allocation2 + $0x8] sm:$0xff]
        %vm572 = vcmp.lt.f32.partialorder %v454, %v570
        %vm573 = vcmp.lt.f32.partialorder %v456, %v571
        %v574 = vsel %vm572, %v454, %v570
        %v575 = vsel %vm573, %v456, %v571
        %vm576 = vcmask 7168
        %577 = vst.msk [vmem:[#allocation2] sm:$0xff] %vm576, %v574
        %578 = vst.msk [vmem:[#allocation2 + $0x8] sm:$0xff] %vm576, %v575
        %v579 = vld [vmem:[#allocation3] sm:$0xff]
        %v580 = vld [vmem:[#allocation3 + $0x8] sm:$0xff]
        %v581 = vsel %vm572, 1, 0
        %v582 = vsel %vm573, 1, 0
        %583 = vset.pattern.permute.xlu0 0
        %584 = vperm.xlu0 %583, %v581
        %v585 = vpop.permute.xlu0 %584
        %586 = vset.pattern.permute.xlu0 0
        %587 = vperm.xlu0 %586, %v582
        %v588 = vpop.permute.xlu0 %587
        %vm589 = vcmp.eq.s32.totalorder %v585, 1
        %vm590 = vcmp.eq.s32.totalorder %v588, 1
        %v591 = vsel %vm589, %v562, %v579
        %v592 = vsel %vm590, %v567, %v580
        %593 = vst.msk [vmem:[#allocation3] sm:$0xff] %vm313, %v591
        %594 = vst.msk [vmem:[#allocation3 + $0x8] sm:$0xff] %vm313, %v592
        // Predicated region
        $region49: #{tpu_custom_call.1} parent=31 // pred_check
          %p595 = pneg %p284
        $region50: #{tpu_custom_call.1} parent=31 // pred_check_branch
          %597 = sbr.rel (%p595) target = $region52
        $region51: #{tpu_custom_call.1} parent=31 // pred_region
          %v598 = vld [vmem:[#allocation3] sm:$0xff]
          %v599 = vld [vmem:[#allocation3 + $0x8] sm:$0xff]
          %600 = vst.msk [vmem:[%s273] sm:$0xff] %vm313, %v598
          %601 = vst.msk [vmem:[%s273 + $0x8] sm:$0xff] %vm313, %v599
          %s602 = smul.u32 %s30, 16
          %v603 = vlaneseq
          %v604 = vshrl.u32 %v603, 7
          %v605 = vadd.s32 %v604, 8
          %v606 = vstv %s602
          %v607 = vadd.s32 %v606, %v604
          %v608 = vadd.s32 %v606, %v605
          %vm609 = vcmp.lt.s32.totalorder %v607, 50
          %vm610 = vcmp.lt.s32.totalorder %v608, 50
          %v611 = vsub.f32 %v598, %v294
          %v612 = vsub.f32 %v599, %v295
          %v613 = vsel %vm609, 1, 0
          %v614 = vsel %vm610, 1, 0
          %vm615 = vcmp.eq.s32.totalorder %v613, 1
          %vm616 = vcmp.eq.s32.totalorder %v614, 1
          %v617 = vsel %vm615, %v611, 0.0
          %v618 = vsel %vm616, %v612, 0.0
          %v619 = vmul.f32 %v617, %v617
          %v620 = vmul.f32 %v618, %v618
          %v621 = vsel %vm313, %v619, 0.0
          %v622 = vsel %vm313, %v620, 0.0
          %v623 = vadd.f32 %v621, %v622
          %624 = vadd.xlane.f32.xlu0 %v623
          %v625 = vpop.xlane.xlu0 %624
          %v626 = vrot.slane %v625, 4
          %v627 = vadd.f32 %v625, %v626
          %v628 = vrot.slane %v627, 2
          %v629 = vadd.f32 %v627, %v628
          %v630 = vrot.slane %v629, 1
          %v631 = vadd.f32 %v629, %v630
          %s632 = vtos %v631
          %v633 = vstv %s632
          %634 = vst [vmem:[%s280] sm:$0xff] %v633
        $region52: #{tpu_custom_call.1} parent=31 // pred_fallthru
          _
        %s635 = sand.u32 %s124, 1
        %s636 = scalar_lea.sflag [#allocation6], %s635
        %s637 = sand.u32 %s124, 1
        %s638 = smul.addr %s637, 16
        %s639 = scalar_lea.vmem [#allocation10], %s638
        %s640 = sand.u32 %s150, 1
        %s641 = scalar_lea.sflag [#allocation12], %s640
        %s642 = sand.u32 %s150, 1
        %s643 = smul.addr %s642, 8
        %s644 = scalar_lea.vmem [#allocation11], %s643
        // Predicated region
        $region53: #{tpu_custom_call.1} parent=31 // pred_check
          %p645 = pneg %p134
        $region54: #{tpu_custom_call.1} parent=31 // pred_check_branch
          %647 = sbr.rel (%p645) target = $region56
        $region55: #{tpu_custom_call.1} parent=31 // pred_region
          %s648 = smul.u32 2, %s30
          %s650 = ssub.s32 256, 256
          %651 = vsyncadd %s636, %s650
          %s652 = smul.addr %s648, 128
          %s653 = scalar_lea.hbm %s3, %s652
          %s654 = sshll.u32 %s639, 4
          %s655 = int_to_ptr.vmem [resolvable:$true] %s654
          %660 = dma.vmem_to_hbm [thread:$0]  %s655, 256, %s653, %s636, 128, 128, 8
        $region56: #{tpu_custom_call.1} parent=31 // pred_fallthru
          _
        // Predicated region
        $region57: #{tpu_custom_call.1} parent=31 // pred_check
          %p661 = pneg %p160
        $region58: #{tpu_custom_call.1} parent=31 // pred_check_branch
          %663 = sbr.rel (%p661) target = $region60
        $region59: #{tpu_custom_call.1} parent=31 // pred_region
          %s665 = ssub.s32 128, 128
          %666 = vsyncadd %s641, %s665
          %s667 = smul.addr %s30, 128
          %s668 = scalar_lea.hbm %s4, %s667
          %s670 = sshll.u32 %s644, 4
          %s671 = int_to_ptr.vmem [resolvable:$true] %s670
          %673 = dma.vmem_to_hbm [thread:$0]  %s671, 128, %s668, %s641
        $region60: #{tpu_custom_call.1} parent=31 // pred_fallthru
          _
      $region32: #{tpu_custom_call.1} parent=5 // pred_fallthru
        _
      %p674 = scmp.le.s32.totalorder 2, %s21
      // Predicated region
      $region61: #{tpu_custom_call.1} parent=5 // pred_check
        %p675 = pneg %p674
      $region62: #{tpu_custom_call.1} parent=5 // pred_check_branch
        %677 = sbr.rel (%p675) target = $region64
      $region63: #{tpu_custom_call.1} parent=5 // pred_region
        %s678 = ssub.s32 %s21, 2
        // Predicated region
        $region65: #{tpu_custom_call.1} parent=63 // pred_check
          %p679 = pneg %p140
        $region66: #{tpu_custom_call.1} parent=63 // pred_check_branch
          %681 = sbr.rel (%p679) target = $region68
        $region67: #{tpu_custom_call.1} parent=63 // pred_region
          %s682 = sand.u32 %s125, 1
          %s683 = scalar_lea.sflag [#allocation6], %s682
          %s684 = sand.u32 %s125, 1
          %s685 = smul.addr %s684, 16
          %s686 = scalar_lea.vmem [#allocation10], %s685
          %687 = dma.done %s683, 256
        $region68: #{tpu_custom_call.1} parent=63 // pred_fallthru
          _
        // Predicated region
        $region69: #{tpu_custom_call.1} parent=63 // pred_check
          %p688 = pneg %p166
        $region70: #{tpu_custom_call.1} parent=63 // pred_check_branch
          %690 = sbr.rel (%p688) target = $region72
        $region71: #{tpu_custom_call.1} parent=63 // pred_region
          %s691 = sand.u32 %s151, 1
          %s692 = scalar_lea.sflag [#allocation12], %s691
          %s693 = sand.u32 %s151, 1
          %s694 = smul.addr %s693, 8
          %s695 = scalar_lea.vmem [#allocation11], %s694
          %696 = dma.done %s692, 128
        $region72: #{tpu_custom_call.1} parent=63 // pred_fallthru
          _
      $region64: #{tpu_custom_call.1} parent=5 // pred_fallthru
        _
    $region6: #{tpu_custom_call.1} parent=1 // loop_footer
      %s25 = sadd.s32 1, %s21
    $region7: #{tpu_custom_call.1} parent=1 // loop_footer_branch
      %20 = sbr.rel target = $region3
    $region8: #{tpu_custom_call.1} parent=1 // loop_exit
      _
    %697 = vsyncpa [#allocation5], 1
    %s698 = scalar_lea.sflag [#allocation5], 1
    %699 = vsyncpa %s698, 1
    %700 = vsyncpa [#allocation8], 1
    %701 = vsyncpa [#allocation6], 1
    %s702 = scalar_lea.sflag [#allocation6], 1
    %703 = vsyncpa %s702, 1
    %704 = vsyncpa [#allocation12], 1
    %s705 = scalar_lea.sflag [#allocation12], 1
    %706 = vsyncpa %s705, 1

</llo_original>
